<compile_context>
chip_gen: v7x
topology: tpu7x:2x2x1
jax: 0.10.0
libtpu: 0.0.40
codegen_flags: <defaults>
</compile_context>

<pallas_src>
import functools

import jax
import jax.numpy as jnp
from jax import lax
from jax.experimental import pallas as pl
from jax.experimental.pallas import tpu as pltpu

NC_PAD = 128  # lane-dense padded class dimension


def mlp_kernel(x_ref, w1_ref, b1_ref, w2_ref, b2_ref, o_ref, *, n_valid):
    # x_ref: (TN, D_in) bf16, w1_ref: (D_in, H) bf16, b1_ref: (1, H) f32
    # w2_ref: (H, NC_PAD) f32, b2_ref: (1, NC_PAD) f32, o_ref: (TN, NC_PAD) f32
    x = x_ref[...]
    h = jnp.dot(x, w1_ref[...], preferred_element_type=jnp.float32) + b1_ref[...]
    h = jnp.maximum(h, 0.0)  # relu
    logits = jnp.dot(h, w2_ref[...], preferred_element_type=jnp.float32) + b2_ref[...]

    # Mask the padded class columns so they don't perturb the logsumexp.
    col = lax.broadcasted_iota(jnp.int32, logits.shape, 1)
    logits = jnp.where(col < n_valid, logits, jnp.float32(-1e30))

    # Numerically stable log_softmax over the last axis.
    m = jnp.max(logits, axis=-1, keepdims=True)
    s = logits - m
    lse = jnp.log(jnp.sum(jnp.exp(s), axis=-1, keepdims=True))
    o_ref[...] = (s - lse).astype(o_ref.dtype)


def unpack_weights(weights, *, D_in, H, n_c):
    """One-time unpack of the flat weight vector into well-shaped arrays."""
    count = 0
    w1 = weights[count:count + D_in * H].reshape(D_in, H)
    count += D_in * H
    b1 = weights[count:count + H].reshape(1, H)
    count += H
    w2 = weights[count:count + H * n_c].reshape(H, n_c)
    count += H * n_c
    b2 = weights[count:count + n_c].reshape(1, n_c)

    # bf16 for the bandwidth-heavy first matmul (f32 accumulation in-kernel).
    w1_bf16 = w1.astype(jnp.bfloat16)
    # Lane-dense (padded) second-layer weights/bias; padded cols masked in-kernel.
    w2_pad = jnp.zeros((H, NC_PAD), jnp.float32).at[:, :n_c].set(w2)
    b2_pad = jnp.zeros((1, NC_PAD), jnp.float32).at[:, :n_c].set(b2)
    return w1_bf16, b1.astype(jnp.float32), w2_pad, b2_pad


@functools.partial(jax.jit, static_argnames=("D_in", "H", "n_c", "block_n"))
def mlp_forward(x, w1, b1, w2p, b2p, *, D_in=784, H=32, n_c=10, block_n=1024):
    # Flatten input (same as torch's x.view(-1, 28*28)) and cast to bf16 so the
    # HBM-resident copy streamed by the kernel is half-width.
    xf = x.reshape(-1, D_in).astype(jnp.bfloat16)
    N = xf.shape[0]

    # Tile size: multiple of 32 sublanes (bf16-friendly), capped at block_n.
    tn = min(block_n, ((N + 31) // 32) * 32)
    n_pad = pl.cdiv(N, tn) * tn
    if n_pad != N:
        xf = jnp.pad(xf, ((0, n_pad - N), (0, 0)))

    grid = (n_pad // tn,)

    out = pl.pallas_call(
        functools.partial(mlp_kernel, n_valid=n_c),
        out_shape=jax.ShapeDtypeStruct((n_pad, NC_PAD), jnp.float32),
        grid=grid,
        in_specs=[
            pl.BlockSpec((tn, D_in), lambda i: (i, 0)),       # x: streams with grid
            pl.BlockSpec((D_in, H), lambda i: (0, 0)),        # W1: VMEM-resident
            pl.BlockSpec((1, H), lambda i: (0, 0)),           # b1
            pl.BlockSpec((H, NC_PAD), lambda i: (0, 0)),      # W2 (padded)
            pl.BlockSpec((1, NC_PAD), lambda i: (0, 0)),      # b2 (padded)
        ],
        out_specs=pl.BlockSpec((tn, NC_PAD), lambda i: (i, 0)),
        compiler_params=pltpu.CompilerParams(
            dimension_semantics=("parallel",)),  # megacore-shardable on v7x
    )(xf, w1, b1, w2p, b2p)

    return out[:N, :n_c]


def reference_forward(x, weights, *, D_in=784, H=32, n_c=10):
    # Same numeric path as the kernel: bf16-quantized x / W1, f32 accumulation.
    xf = x.reshape(-1, D_in).astype(jnp.bfloat16).astype(jnp.float32)
    count = 0
    w1 = weights[count:count + D_in * H].reshape(D_in, H)
    count += D_in * H
    b1 = weights[count:count + H]
    count += H
    w2 = weights[count:count + H * n_c].reshape(H, n_c)
    count += H * n_c
    b2 = weights[count:count + n_c]
    w1q = w1.astype(jnp.bfloat16).astype(jnp.float32)
    h = jnp.maximum(xf @ w1q + b1, 0.0)
    logits = h @ w2 + b2
    return jax.nn.log_softmax(logits, axis=-1)


if __name__ == "__main__":
    # Small deterministic setup consistent with the module's forward:
    # D_in fixed to 28*28=784 by x.view; use H=32, n_classes=10, batch=2.
    D_in, H, n_c = 784, 32, 10
    batch = 2

    key = jax.random.PRNGKey(0)
    kx, kw = jax.random.split(key)

    x = jax.random.normal(kx, (batch, 1, 28, 28), dtype=jnp.float32)

    # Flat weight vector, same packing order as the module (n_hidden_layers=1):
    # [W1 (D_in*H) | b1 (H) | W2 (H*n_c) | b2 (n_c)]
    n_params = D_in * H + H + H * n_c + n_c
    weights = 0.05 * jax.random.normal(kw, (n_params,), dtype=jnp.float32)

    # One-time weight unpack (outside the per-call hot path).
    w1, b1, w2p, b2p = unpack_weights(weights, D_in=D_in, H=H, n_c=n_c)

    out = mlp_forward(x, w1, b1, w2p, b2p, D_in=D_in, H=H, n_c=n_c)
    out = jax.block_until_ready(out)

    ref = reference_forward(x, weights, D_in=D_in, H=H, n_c=n_c)
    assert out.shape == (batch, n_c)
    assert jnp.allclose(out, ref, atol=2e-3, rtol=2e-3), (
        float(jnp.max(jnp.abs(out - ref))))

    print("KERNEL_OK")
</pallas_src>

<mosaic_0001>
module attributes {stable_mosaic.version = 11 : i64} {
  func.func @mlp_kernel(%arg0: i32, %arg1: memref<32x784xbf16, #tpu.memory_space<vmem>>, %arg2: memref<784x32xbf16, #tpu.memory_space<vmem>>, %arg3: memref<1x32xf32, #tpu.memory_space<vmem>>, %arg4: memref<32x128xf32, #tpu.memory_space<vmem>>, %arg5: memref<1x128xf32, #tpu.memory_space<vmem>>, %arg6: memref<32x128xf32, #tpu.memory_space<vmem>>) attributes {dimension_semantics = [#tpu.dimension_semantics<parallel>], iteration_bounds = array<i64: 1>, scalar_prefetch = 0 : i64, scratch_operands = 0 : i64, tpu.core_type = #tpu.core_type<tc>, window_params = [{transform_indices = @transform_0, window_bounds = array<i64: 32, 784>}, {pipeline_mode = #tpu.pipeline_mode<synchronous>, transform_indices = @transform_1, window_bounds = array<i64: 784, 32>}, {pipeline_mode = #tpu.pipeline_mode<synchronous>, transform_indices = @transform_2, window_bounds = array<i64: 1, 32>}, {pipeline_mode = #tpu.pipeline_mode<synchronous>, transform_indices = @transform_3, window_bounds = array<i64: 32, 128>}, {pipeline_mode = #tpu.pipeline_mode<synchronous>, transform_indices = @transform_4, window_bounds = array<i64: 1, 128>}, {transform_indices = @transform_5, window_bounds = array<i64: 32, 128>}]} {
    %c0 = arith.constant 0 : index
    %c0_0 = arith.constant 0 : index
    %0 = vector.load %arg1[%c0, %c0_0] : memref<32x784xbf16, #tpu.memory_space<vmem>>, vector<32x784xbf16>
    %c0_1 = arith.constant 0 : index
    %c0_2 = arith.constant 0 : index
    %1 = vector.load %arg2[%c0_1, %c0_2] : memref<784x32xbf16, #tpu.memory_space<vmem>>, vector<784x32xbf16>
    %cst = arith.constant dense<0.000000e+00> : vector<32x32xf32>
    %2 = tpu.matmul %0, %1, %cst {dimension_numbers = #tpu.dot_dimension_numbers<[1], [0], [0], [1], [0, 0, 1, 1], [], []>} : vector<32x784xbf16>, vector<784x32xbf16>, vector<32x32xf32> -> vector<32x32xf32>
    %c0_3 = arith.constant 0 : index
    %c0_4 = arith.constant 0 : index
    %3 = vector.load %arg3[%c0_3, %c0_4] : memref<1x32xf32, #tpu.memory_space<vmem>>, vector<1x32xf32>
    %4 = vector.broadcast %3 : vector<1x32xf32> to vector<32x32xf32>
    %5 = arith.addf %2, %4 : vector<32x32xf32>
    %cst_5 = arith.constant 0.000000e+00 : f32
    %6 = vector.broadcast %cst_5 : f32 to vector<32x32xf32>
    %7 = arith.maximumf %5, %6 : vector<32x32xf32>
    %c0_6 = arith.constant 0 : index
    %c0_7 = arith.constant 0 : index
    %8 = vector.load %arg4[%c0_6, %c0_7] : memref<32x128xf32, #tpu.memory_space<vmem>>, vector<32x128xf32>
    %cst_8 = arith.constant dense<0.000000e+00> : vector<32x128xf32>
    %9 = tpu.matmul %7, %8, %cst_8 {dimension_numbers = #tpu.dot_dimension_numbers<[1], [0], [0], [1], [0, 0, 1, 1], [], []>} : vector<32x32xf32>, vector<32x128xf32>, vector<32x128xf32> -> vector<32x128xf32>
    %c0_9 = arith.constant 0 : index
    %c0_10 = arith.constant 0 : index
    %10 = vector.load %arg5[%c0_9, %c0_10] : memref<1x128xf32, #tpu.memory_space<vmem>>, vector<1x128xf32>
    %11 = vector.broadcast %10 : vector<1x128xf32> to vector<32x128xf32>
    %12 = arith.addf %9, %11 : vector<32x128xf32>
    %13 = tpu.iota {dimensions = array<i32: 1>} : vector<32x128xi32>
    %c10_i32 = arith.constant 10 : i32
    %14 = vector.broadcast %c10_i32 : i32 to vector<32x128xi32>
    %15 = arith.cmpi slt, %13, %14 : vector<32x128xi32>
    %cst_11 = arith.constant -1.000000e+30 : f32
    %16 = vector.broadcast %cst_11 : f32 to vector<32x128xf32>
    %17 = arith.select %15, %12, %16 : vector<32x128xi1>, vector<32x128xf32>
    %cst_12 = arith.constant dense<0xFF800000> : vector<32xf32>
    %18 = vector.multi_reduction <maximumf>, %17, %cst_12 [1] : vector<32x128xf32> to vector<32xf32>
    %19 = vector.shape_cast %18 : vector<32xf32> to vector<32x1xf32>
    %20 = vector.broadcast %19 : vector<32x1xf32> to vector<32x128xf32>
    %21 = arith.subf %17, %20 : vector<32x128xf32>
    %22 = math.exp %21 : vector<32x128xf32>
    %cst_13 = arith.constant dense<0.000000e+00> : vector<32xf32>
    %23 = vector.multi_reduction <add>, %22, %cst_13 [1] : vector<32x128xf32> to vector<32xf32>
    %24 = vector.shape_cast %23 : vector<32xf32> to vector<32x1xf32>
    %25 = math.log %24 : vector<32x1xf32>
    %26 = vector.broadcast %25 : vector<32x1xf32> to vector<32x128xf32>
    %27 = arith.subf %21, %26 : vector<32x128xf32>
    %c0_14 = arith.constant 0 : index
    %c0_15 = arith.constant 0 : index
    %28 = vector.load %arg6[%c0_14, %c0_15] : memref<32x128xf32, #tpu.memory_space<vmem>>, vector<32x128xf32>
    tpu.vector_store %arg6[%c0_14, %c0_15], %27 {strides = array<i32>} : memref<32x128xf32, #tpu.memory_space<vmem>>, vector<32x128xf32>,
    return
  }
  func.func @transform_0(%arg0: i32) -> (i32, i32) {
    %c0_i32 = arith.constant 0 : i32
    %c0_i32_0 = arith.constant 0 : i32
    return %arg0, %c0_i32 : i32, i32
  }
  func.func @transform_1(%arg0: i32) -> (i32, i32) {
    %c0_i32 = arith.constant 0 : i32
    %c0_i32_0 = arith.constant 0 : i32
    %c0_i32_1 = arith.constant 0 : i32
    return %c0_i32, %c0_i32_0 : i32, i32
  }
  func.func @transform_2(%arg0: i32) -> (i32, i32) {
    %c0_i32 = arith.constant 0 : i32
    %c0_i32_0 = arith.constant 0 : i32
    %c0_i32_1 = arith.constant 0 : i32
    return %c0_i32, %c0_i32_0 : i32, i32
  }
  func.func @transform_3(%arg0: i32) -> (i32, i32) {
    %c0_i32 = arith.constant 0 : i32
    %c0_i32_0 = arith.constant 0 : i32
    %c0_i32_1 = arith.constant 0 : i32
    return %c0_i32, %c0_i32_0 : i32, i32
  }
  func.func @transform_4(%arg0: i32) -> (i32, i32) {
    %c0_i32 = arith.constant 0 : i32
    %c0_i32_0 = arith.constant 0 : i32
    %c0_i32_1 = arith.constant 0 : i32
    return %c0_i32, %c0_i32_0 : i32, i32
  }
  func.func @transform_5(%arg0: i32) -> (i32, i32) {
    %c0_i32 = arith.constant 0 : i32
    %c0_i32_0 = arith.constant 0 : i32
    return %arg0, %c0_i32 : i32, i32
  }
}

</mosaic_0001>

<llo_original>
// kernel: mlp_forward.1
$region0: #{mlp_forward.1}
  #allocation0 [shape = 'u32[]', space=smem, size = 0x4, offset = 0x4, fixed_abs, tag = 'smem constant byte address 0x4 - core index']
  #allocation1 [shape = 'u32[144,128]{1,0:T(1,128)}', space=vmem, size = 0x12000, scoped, tag = 'internal scratch']
  %s0 = inlined_call_operand.vmem [shape: bf16[32,784], index: 0, kind: input, shape index: {}]
  %s1 = inlined_call_operand.vmem [shape: bf16[784,32], index: 1, kind: input, shape index: {}]
  %s2 = inlined_call_operand.vmem [shape: f32[1,32], index: 2, kind: input, shape index: {}]
  %s3 = inlined_call_operand.vmem [shape: f32[32,128], index: 3, kind: input, shape index: {}]
  %s4 = inlined_call_operand.vmem [shape: f32[1,128], index: 4, kind: input, shape index: {}]
  %s5 = inlined_call_operand.vmem [shape: f32[32,128], index: 5, kind: output, shape index: {}]
  %s6 = sld [smem:[#allocation0]]
  $region30: #{mlp_forward.1} parent=0
    _
  %s8 = ssub.s32 1, %s6
  %s9 = scalar_select 0, %s8, %s6
  // Predicated region
  $region2: #{mlp_forward.1} parent=0 // pred_check
    _
  $region3: #{mlp_forward.1} parent=0 // pred_check_branch
    %11 = sbr.rel (0) target = $region5
  $region4: #{mlp_forward.1} parent=0 // pred_region
    _
  $region5: #{mlp_forward.1} parent=0 // pred_fallthru
    _
  // Predicated region
  $region6: #{mlp_forward.1} parent=0 // pred_check
    _
  $region7: #{mlp_forward.1} parent=0 // pred_check_branch
    %13 = sbr.rel (0) target = $region9
  $region8: #{mlp_forward.1} parent=0 // pred_region
    _
  $region9: #{mlp_forward.1} parent=0 // pred_fallthru
    _
  // Predicated region
  $region10: #{mlp_forward.1} parent=0 // pred_check
    _
  $region11: #{mlp_forward.1} parent=0 // pred_check_branch
    %15 = sbr.rel (0) target = $region13
  $region12: #{mlp_forward.1} parent=0 // pred_region
    _
  $region13: #{mlp_forward.1} parent=0 // pred_fallthru
    _
  // Predicated region
  $region14: #{mlp_forward.1} parent=0 // pred_check
    _
  $region15: #{mlp_forward.1} parent=0 // pred_check_branch
    %17 = sbr.rel (0) target = $region17
  $region16: #{mlp_forward.1} parent=0 // pred_region
    _
  $region17: #{mlp_forward.1} parent=0 // pred_fallthru
    _
  // Predicated region
  $region18: #{mlp_forward.1} parent=0 // pred_check
    _
  $region19: #{mlp_forward.1} parent=0 // pred_check_branch
    %19 = sbr.rel (0) target = $region21
  $region20: #{mlp_forward.1} parent=0 // pred_region
    _
  $region21: #{mlp_forward.1} parent=0 // pred_fallthru
    _
  %v21 = vld [vmem:[%s0] sm:$0xff]
  %v22 = vld [vmem:[%s0 + $0x8] sm:$0xff]
  %v23 = vld [vmem:[%s0 + $0x10] sm:$0xff]
  %v24 = vld [vmem:[%s0 + $0x18] sm:$0xf]
  %v25 = vld [vmem:[%s0 + $0x1c] sm:$0xff]
  %v26 = vld [vmem:[%s0 + $0x24] sm:$0xff]
  %v27 = vld [vmem:[%s0 + $0x2c] sm:$0xff]
  %v28 = vld [vmem:[%s0 + $0x34] sm:$0xf]
  %v29 = vld [vmem:[%s0 + $0x38] sm:$0xff]
  %v30 = vld [vmem:[%s0 + $0x40] sm:$0xff]
  %v31 = vld [vmem:[%s0 + $0x48] sm:$0xff]
  %v32 = vld [vmem:[%s0 + $0x50] sm:$0xf]
  %v33 = vld [vmem:[%s0 + $0x54] sm:$0xff]
  %v34 = vld [vmem:[%s0 + $0x5c] sm:$0xff]
  %v35 = vld [vmem:[%s0 + $0x64] sm:$0xff]
  %v36 = vld [vmem:[%s0 + $0x6c] sm:$0xf]
  %v37 = vld [vmem:[%s1] sm:$0xf]
  %v38 = vld [vmem:[%s1 + $0x4] sm:$0xf]
  %v39 = vld [vmem:[%s1 + $0x8] sm:$0xf]
  %v40 = vld [vmem:[%s1 + $0xc] sm:$0xf]
  %v41 = vld [vmem:[%s1 + $0x10] sm:$0xf]
  %v42 = vld [vmem:[%s1 + $0x14] sm:$0xf]
  %v43 = vld [vmem:[%s1 + $0x18] sm:$0xf]
  %v44 = vld [vmem:[%s1 + $0x1c] sm:$0xf]
  %v45 = vld [vmem:[%s1 + $0x20] sm:$0xf]
  %v46 = vld [vmem:[%s1 + $0x24] sm:$0xf]
  %v47 = vld [vmem:[%s1 + $0x28] sm:$0xf]
  %v48 = vld [vmem:[%s1 + $0x2c] sm:$0xf]
  %v49 = vld [vmem:[%s1 + $0x30] sm:$0xf]
  %v50 = vld [vmem:[%s1 + $0x34] sm:$0xf]
  %v51 = vld [vmem:[%s1 + $0x38] sm:$0xf]
  %v52 = vld [vmem:[%s1 + $0x3c] sm:$0xf]
  %v53 = vld [vmem:[%s1 + $0x40] sm:$0xf]
  %v54 = vld [vmem:[%s1 + $0x44] sm:$0xf]
  %v55 = vld [vmem:[%s1 + $0x48] sm:$0xf]
  %v56 = vld [vmem:[%s1 + $0x4c] sm:$0xf]
  %v57 = vld [vmem:[%s1 + $0x50] sm:$0xf]
  %v58 = vld [vmem:[%s1 + $0x54] sm:$0xf]
  %v59 = vld [vmem:[%s1 + $0x58] sm:$0xf]
  %v60 = vld [vmem:[%s1 + $0x5c] sm:$0xf]
  %v61 = vld [vmem:[%s1 + $0x60] sm:$0xf]
  %v62 = vld [vmem:[%s1 + $0x64] sm:$0xf]
  %v63 = vld [vmem:[%s1 + $0x68] sm:$0xf]
  %v64 = vld [vmem:[%s1 + $0x6c] sm:$0xf]
  %v65 = vld [vmem:[%s1 + $0x70] sm:$0xf]
  %v66 = vld [vmem:[%s1 + $0x74] sm:$0xf]
  %v67 = vld [vmem:[%s1 + $0x78] sm:$0xf]
  %v68 = vld [vmem:[%s1 + $0x7c] sm:$0xf]
  %v69 = vld [vmem:[%s1 + $0x80] sm:$0xf]
  %v70 = vld [vmem:[%s1 + $0x84] sm:$0xf]
  %v71 = vld [vmem:[%s1 + $0x88] sm:$0xf]
  %v72 = vld [vmem:[%s1 + $0x8c] sm:$0xf]
  %v73 = vld [vmem:[%s1 + $0x90] sm:$0xf]
  %v74 = vld [vmem:[%s1 + $0x94] sm:$0xf]
  %v75 = vld [vmem:[%s1 + $0x98] sm:$0xf]
  %v76 = vld [vmem:[%s1 + $0x9c] sm:$0xf]
  %v77 = vld [vmem:[%s1 + $0xa0] sm:$0xf]
  %v78 = vld [vmem:[%s1 + $0xa4] sm:$0xf]
  %v79 = vld [vmem:[%s1 + $0xa8] sm:$0xf]
  %v80 = vld [vmem:[%s1 + $0xac] sm:$0xf]
  %v81 = vld [vmem:[%s1 + $0xb0] sm:$0xf]
  %v82 = vld [vmem:[%s1 + $0xb4] sm:$0xf]
  %v83 = vld [vmem:[%s1 + $0xb8] sm:$0xf]
  %v84 = vld [vmem:[%s1 + $0xbc] sm:$0xf]
  %v85 = vld [vmem:[%s1 + $0xc0] sm:$0xf]
  %v86 = vld [vmem:[%s1 + $0xc4] sm:$0xf]
  %v87 = vld [vmem:[%s1 + $0xc8] sm:$0xf]
  %v88 = vld [vmem:[%s1 + $0xcc] sm:$0xf]
  %v89 = vld [vmem:[%s1 + $0xd0] sm:$0xf]
  %v90 = vld [vmem:[%s1 + $0xd4] sm:$0xf]
  %v91 = vld [vmem:[%s1 + $0xd8] sm:$0xf]
  %v92 = vld [vmem:[%s1 + $0xdc] sm:$0xf]
  %v93 = vld [vmem:[%s1 + $0xe0] sm:$0xf]
  %v94 = vld [vmem:[%s1 + $0xe4] sm:$0xf]
  %v95 = vld [vmem:[%s1 + $0xe8] sm:$0xf]
  %v96 = vld [vmem:[%s1 + $0xec] sm:$0xf]
  %v97 = vld [vmem:[%s1 + $0xf0] sm:$0xf]
  %v98 = vld [vmem:[%s1 + $0xf4] sm:$0xf]
  %v99 = vld [vmem:[%s1 + $0xf8] sm:$0xf]
  %v100 = vld [vmem:[%s1 + $0xfc] sm:$0xf]
  %v101 = vld [vmem:[%s1 + $0x100] sm:$0xf]
  %v102 = vld [vmem:[%s1 + $0x104] sm:$0xf]
  %v103 = vld [vmem:[%s1 + $0x108] sm:$0xf]
  %v104 = vld [vmem:[%s1 + $0x10c] sm:$0xf]
  %v105 = vld [vmem:[%s1 + $0x110] sm:$0xf]
  %v106 = vld [vmem:[%s1 + $0x114] sm:$0xf]
  %v107 = vld [vmem:[%s1 + $0x118] sm:$0xf]
  %v108 = vld [vmem:[%s1 + $0x11c] sm:$0xf]
  %v109 = vld [vmem:[%s1 + $0x120] sm:$0xf]
  %v110 = vld [vmem:[%s1 + $0x124] sm:$0xf]
  %v111 = vld [vmem:[%s1 + $0x128] sm:$0xf]
  %v112 = vld [vmem:[%s1 + $0x12c] sm:$0xf]
  %v113 = vld [vmem:[%s1 + $0x130] sm:$0xf]
  %v114 = vld [vmem:[%s1 + $0x134] sm:$0xf]
  %v115 = vld [vmem:[%s1 + $0x138] sm:$0xf]
  %v116 = vld [vmem:[%s1 + $0x13c] sm:$0xf]
  %v117 = vld [vmem:[%s1 + $0x140] sm:$0xf]
  %v118 = vld [vmem:[%s1 + $0x144] sm:$0xf]
  %v119 = vld [vmem:[%s1 + $0x148] sm:$0xf]
  %v120 = vld [vmem:[%s1 + $0x14c] sm:$0xf]
  %v121 = vld [vmem:[%s1 + $0x150] sm:$0xf]
  %v122 = vld [vmem:[%s1 + $0x154] sm:$0xf]
  %v123 = vld [vmem:[%s1 + $0x158] sm:$0xf]
  %v124 = vld [vmem:[%s1 + $0x15c] sm:$0xf]
  %v125 = vld [vmem:[%s1 + $0x160] sm:$0xf]
  %v126 = vld [vmem:[%s1 + $0x164] sm:$0xf]
  %v127 = vld [vmem:[%s1 + $0x168] sm:$0xf]
  %v128 = vld [vmem:[%s1 + $0x16c] sm:$0xf]
  %v129 = vld [vmem:[%s1 + $0x170] sm:$0xf]
  %v130 = vld [vmem:[%s1 + $0x174] sm:$0xf]
  %v131 = vld [vmem:[%s1 + $0x178] sm:$0xf]
  %v132 = vld [vmem:[%s1 + $0x17c] sm:$0xf]
  %v133 = vld [vmem:[%s1 + $0x180] sm:$0xf]
  %v134 = vld [vmem:[%s1 + $0x184] sm:$0xf]
  %v135 = vld [vmem:[%s2] sm:$0x1]
  %v137 = vlaneseq
  %v138 = vshrl.u32 %v137, 7
  %v139 = vsub.s32 0, %v138
  %v140 = vrot.slane %v135, %v139
  %v158 = vunpack.c.l.b16 %v21
  %v159 = vunpack.c.h.b16 %v21
  %v160 = vunpack.c.l.b16 %v22
  %v161 = vunpack.c.h.b16 %v22
  %v162 = vunpack.c.l.b16 %v23
  %v163 = vunpack.c.h.b16 %v23
  %v164 = vunpack.c.l.b16 %v24
  %v165 = vunpack.c.l.b16 %v25
  %v166 = vunpack.c.h.b16 %v25
  %v167 = vunpack.c.l.b16 %v26
  %v168 = vunpack.c.h.b16 %v26
  %v169 = vunpack.c.l.b16 %v27
  %v170 = vunpack.c.h.b16 %v27
  %v171 = vunpack.c.l.b16 %v28
  %v172 = vunpack.c.l.b16 %v29
  %v173 = vunpack.c.h.b16 %v29
  %v174 = vunpack.c.l.b16 %v30
  %v175 = vunpack.c.h.b16 %v30
  %v176 = vunpack.c.l.b16 %v31
  %v177 = vunpack.c.h.b16 %v31
  %v178 = vunpack.c.l.b16 %v32
  %v179 = vunpack.c.l.b16 %v33
  %v180 = vunpack.c.h.b16 %v33
  %v181 = vunpack.c.l.b16 %v34
  %v182 = vunpack.c.h.b16 %v34
  %v183 = vunpack.c.l.b16 %v35
  %v184 = vunpack.c.h.b16 %v35
  %v185 = vunpack.c.l.b16 %v36
  %v186 = vpack.c.b16 %v165, %v158
  %v187 = vpack.c.b16 %v166, %v159
  %v188 = vpack.c.b16 %v167, %v160
  %v189 = vpack.c.b16 %v168, %v161
  %v190 = vpack.c.b16 %v169, %v162
  %v191 = vpack.c.b16 %v170, %v163
  %v192 = vpack.c.b16 %v171, %v164
  %v193 = vpack.c.b16 %v179, %v172
  %v194 = vpack.c.b16 %v180, %v173
  %v195 = vpack.c.b16 %v181, %v174
  %v196 = vpack.c.b16 %v182, %v175
  %v197 = vpack.c.b16 %v183, %v176
  %v198 = vpack.c.b16 %v184, %v177
  %v199 = vpack.c.b16 %v185, %v178
  %v310 = vunpack.c.l.b16 %v37
  %v311 = vunpack.c.l.b16 %v38
  %v312 = vunpack.c.l.b16 %v39
  %v313 = vunpack.c.l.b16 %v40
  %v314 = vunpack.c.l.b16 %v41
  %v315 = vunpack.c.l.b16 %v42
  %v316 = vunpack.c.l.b16 %v43
  %v317 = vunpack.c.l.b16 %v44
  %v318 = vunpack.c.l.b16 %v45
  %v319 = vunpack.c.l.b16 %v46
  %v320 = vunpack.c.l.b16 %v47
  %v321 = vunpack.c.l.b16 %v48
  %v322 = vunpack.c.l.b16 %v49
  %v323 = vunpack.c.l.b16 %v50
  %v324 = vunpack.c.l.b16 %v51
  %v325 = vunpack.c.l.b16 %v52
  %v326 = vunpack.c.l.b16 %v53
  %v327 = vunpack.c.l.b16 %v54
  %v328 = vunpack.c.l.b16 %v55
  %v329 = vunpack.c.l.b16 %v56
  %v330 = vunpack.c.l.b16 %v57
  %v331 = vunpack.c.l.b16 %v58
  %v332 = vunpack.c.l.b16 %v59
  %v333 = vunpack.c.l.b16 %v60
  %v334 = vunpack.c.l.b16 %v61
  %v335 = vunpack.c.l.b16 %v62
  %v336 = vunpack.c.l.b16 %v63
  %v337 = vunpack.c.l.b16 %v64
  %v338 = vunpack.c.l.b16 %v65
  %v339 = vunpack.c.l.b16 %v66
  %v340 = vunpack.c.l.b16 %v67
  %v341 = vunpack.c.l.b16 %v68
  %v342 = vunpack.c.l.b16 %v69
  %v343 = vunpack.c.l.b16 %v70
  %v344 = vunpack.c.l.b16 %v71
  %v345 = vunpack.c.l.b16 %v72
  %v346 = vunpack.c.l.b16 %v73
  %v347 = vunpack.c.l.b16 %v74
  %v348 = vunpack.c.l.b16 %v75
  %v349 = vunpack.c.l.b16 %v76
  %v350 = vunpack.c.l.b16 %v77
  %v351 = vunpack.c.l.b16 %v78
  %v352 = vunpack.c.l.b16 %v79
  %v353 = vunpack.c.l.b16 %v80
  %v354 = vunpack.c.l.b16 %v81
  %v355 = vunpack.c.l.b16 %v82
  %v356 = vunpack.c.l.b16 %v83
  %v357 = vunpack.c.l.b16 %v84
  %v358 = vunpack.c.l.b16 %v85
  %v359 = vunpack.c.l.b16 %v86
  %v360 = vunpack.c.l.b16 %v87
  %v361 = vunpack.c.l.b16 %v88
  %v362 = vunpack.c.l.b16 %v89
  %v363 = vunpack.c.l.b16 %v90
  %v364 = vunpack.c.l.b16 %v91
  %v365 = vunpack.c.l.b16 %v92
  %v366 = vunpack.c.l.b16 %v93
  %v367 = vunpack.c.l.b16 %v94
  %v368 = vunpack.c.l.b16 %v95
  %v369 = vunpack.c.l.b16 %v96
  %v370 = vunpack.c.l.b16 %v97
  %v371 = vunpack.c.l.b16 %v98
  %v372 = vunpack.c.l.b16 %v99
  %v373 = vunpack.c.l.b16 %v100
  %v374 = vunpack.c.l.b16 %v101
  %v375 = vunpack.c.l.b16 %v102
  %v376 = vunpack.c.l.b16 %v103
  %v377 = vunpack.c.l.b16 %v104
  %v378 = vunpack.c.l.b16 %v105
  %v379 = vunpack.c.l.b16 %v106
  %v380 = vunpack.c.l.b16 %v107
  %v381 = vunpack.c.l.b16 %v108
  %v382 = vunpack.c.l.b16 %v109
  %v383 = vunpack.c.l.b16 %v110
  %v384 = vunpack.c.l.b16 %v111
  %v385 = vunpack.c.l.b16 %v112
  %v386 = vunpack.c.l.b16 %v113
  %v387 = vunpack.c.l.b16 %v114
  %v388 = vunpack.c.l.b16 %v115
  %v389 = vunpack.c.l.b16 %v116
  %v390 = vunpack.c.l.b16 %v117
  %v391 = vunpack.c.l.b16 %v118
  %v392 = vunpack.c.l.b16 %v119
  %v393 = vunpack.c.l.b16 %v120
  %v394 = vunpack.c.l.b16 %v121
  %v395 = vunpack.c.l.b16 %v122
  %v396 = vunpack.c.l.b16 %v123
  %v397 = vunpack.c.l.b16 %v124
  %v398 = vunpack.c.l.b16 %v125
  %v399 = vunpack.c.l.b16 %v126
  %v400 = vunpack.c.l.b16 %v127
  %v401 = vunpack.c.l.b16 %v128
  %v402 = vunpack.c.l.b16 %v129
  %v403 = vunpack.c.l.b16 %v130
  %v404 = vunpack.c.l.b16 %v131
  %v405 = vunpack.c.l.b16 %v132
  %v406 = vunpack.c.l.b16 %v133
  %v407 = vunpack.c.l.b16 %v134
  %v408 = vpack.c.b16 %v311, %v310
  %v409 = vpack.c.b16 %v313, %v312
  %v410 = vpack.c.b16 %v315, %v314
  %v411 = vpack.c.b16 %v317, %v316
  %v412 = vpack.c.b16 %v319, %v318
  %v413 = vpack.c.b16 %v321, %v320
  %v414 = vpack.c.b16 %v323, %v322
  %v415 = vpack.c.b16 %v325, %v324
  %v416 = vpack.c.b16 %v327, %v326
  %v417 = vpack.c.b16 %v329, %v328
  %v418 = vpack.c.b16 %v331, %v330
  %v419 = vpack.c.b16 %v333, %v332
  %v420 = vpack.c.b16 %v335, %v334
  %v421 = vpack.c.b16 %v337, %v336
  %v422 = vpack.c.b16 %v339, %v338
  %v423 = vpack.c.b16 %v341, %v340
  %v424 = vpack.c.b16 %v343, %v342
  %v425 = vpack.c.b16 %v345, %v344
  %v426 = vpack.c.b16 %v347, %v346
  %v427 = vpack.c.b16 %v349, %v348
  %v428 = vpack.c.b16 %v351, %v350
  %v429 = vpack.c.b16 %v353, %v352
  %v430 = vpack.c.b16 %v355, %v354
  %v431 = vpack.c.b16 %v357, %v356
  %v432 = vpack.c.b16 %v359, %v358
  %v433 = vpack.c.b16 %v361, %v360
  %v434 = vpack.c.b16 %v363, %v362
  %v435 = vpack.c.b16 %v365, %v364
  %v436 = vpack.c.b16 %v367, %v366
  %v437 = vpack.c.b16 %v369, %v368
  %v438 = vpack.c.b16 %v371, %v370
  %v439 = vpack.c.b16 %v373, %v372
  %v440 = vpack.c.b16 %v375, %v374
  %v441 = vpack.c.b16 %v377, %v376
  %v442 = vpack.c.b16 %v379, %v378
  %v443 = vpack.c.b16 %v381, %v380
  %v444 = vpack.c.b16 %v383, %v382
  %v445 = vpack.c.b16 %v385, %v384
  %v446 = vpack.c.b16 %v387, %v386
  %v447 = vpack.c.b16 %v389, %v388
  %v448 = vpack.c.b16 %v391, %v390
  %v449 = vpack.c.b16 %v393, %v392
  %v450 = vpack.c.b16 %v395, %v394
  %v451 = vpack.c.b16 %v397, %v396
  %v452 = vpack.c.b16 %v399, %v398
  %v453 = vpack.c.b16 %v401, %v400
  %v454 = vpack.c.b16 %v403, %v402
  %v455 = vpack.c.b16 %v405, %v404
  %v456 = vpack.c.b16 %v407, %v406
  %vm506 = vcmask 130048
  %v508 = vsel %vm506, %v192, 0
  %v511 = vsel %vm506, %v199, 0
  %513 = vmatprep.subr.bf16.mxu0 0
  %514 = vmatpush1.bf16.msra.mxu0 %v408
  %515 = vmatprep.subr.bf16.mxu0 0
  %516 = vmatpush1.bf16.msra.mxu0 %v409
  %517 = vmatprep.subr.bf16.mxu0 0
  %518 = vmatpush1.bf16.msra.mxu0 %v410
  %519 = vmatprep.subr.bf16.mxu0 0
  %520 = vmatpush1.bf16.msra.mxu0 %v411
  %521 = vmatprep.subr.bf16.mxu0 0
  %522 = vmatpush1.bf16.msra.mxu0 %v412
  %523 = vmatprep.subr.bf16.mxu0 0
  %524 = vmatpush1.bf16.msra.mxu0 %v413
  %525 = vmatprep.subr.bf16.mxu0 0
  %526 = vmatpush1.bf16.msra.mxu0 %v414
  %527 = vmatprep.subr.bf16.mxu0 0
  %528 = vmatpush1.bf16.msra.mxu0 %v415
  %529 = vmatprep.subr.bf16.mxu0 0
  %530 = vmatpush1.bf16.msra.mxu0 %v416
  %531 = vmatprep.subr.bf16.mxu0 0
  %532 = vmatpush1.bf16.msra.mxu0 %v417
  %533 = vmatprep.subr.bf16.mxu0 0
  %534 = vmatpush1.bf16.msra.mxu0 %v418
  %535 = vmatprep.subr.bf16.mxu0 0
  %536 = vmatpush1.bf16.msra.mxu0 %v419
  %537 = vmatprep.subr.bf16.mxu0 0
  %538 = vmatpush1.bf16.msra.mxu0 %v420
  %539 = vmatprep.subr.bf16.mxu0 0
  %540 = vmatpush1.bf16.msra.mxu0 %v421
  %541 = vmatprep.subr.bf16.mxu0 0
  %542 = vmatpush1.bf16.msra.mxu0 %v422
  %543 = vmatprep.subr.bf16.mxu0 0
  %544 = vmatpush1.bf16.msra.mxu0 %v423
  %545 = vmatprep.mubr.bf16.mxu0 %v187
  %546 = vmatmul.mubr.bf16.gmra.mrb[0].mxu0 %v186
  %v547 = vpop.f32.mrb[0].mxu0
  %v548 = vadd.f32 %v140, %v547
  %v549 = vpop.f32.mrb[0].mxu0
  %v550 = vpop.f32.mrb[0].mxu0
  %v551 = vadd.f32 %v140, %v550
  %v552 = vpop.f32.mrb[0].mxu0
  %553 = vmatprep.mubr.bf16.mxu0 %v194
  %554 = vmatmul.mubr.bf16.gmra.mrb[0].mxu0 %v193
  %v555 = vpop.f32.mrb[0].mxu0
  %v556 = vadd.f32 %v140, %v555
  %v557 = vpop.f32.mrb[0].mxu0
  %v558 = vpop.f32.mrb[0].mxu0
  %v559 = vadd.f32 %v140, %v558
  %v560 = vpop.f32.mrb[0].mxu0
  %561 = vdwg.mxu0
  %562 = vmatprep.subr.bf16.mxu0 0
  %563 = vmatpush1.bf16.msra.mxu0 %v424
  %564 = vmatprep.subr.bf16.mxu0 0
  %565 = vmatpush1.bf16.msra.mxu0 %v425
  %566 = vmatprep.subr.bf16.mxu0 0
  %567 = vmatpush1.bf16.msra.mxu0 %v426
  %568 = vmatprep.subr.bf16.mxu0 0
  %569 = vmatpush1.bf16.msra.mxu0 %v427
  %570 = vmatprep.subr.bf16.mxu0 0
  %571 = vmatpush1.bf16.msra.mxu0 %v428
  %572 = vmatprep.subr.bf16.mxu0 0
  %573 = vmatpush1.bf16.msra.mxu0 %v429
  %574 = vmatprep.subr.bf16.mxu0 0
  %575 = vmatpush1.bf16.msra.mxu0 %v430
  %576 = vmatprep.subr.bf16.mxu0 0
  %577 = vmatpush1.bf16.msra.mxu0 %v431
  %578 = vmatprep.subr.bf16.mxu0 0
  %579 = vmatpush1.bf16.msra.mxu0 %v432
  %580 = vmatprep.subr.bf16.mxu0 0
  %581 = vmatpush1.bf16.msra.mxu0 %v433
  %582 = vmatprep.subr.bf16.mxu0 0
  %583 = vmatpush1.bf16.msra.mxu0 %v434
  %584 = vmatprep.subr.bf16.mxu0 0
  %585 = vmatpush1.bf16.msra.mxu0 %v435
  %586 = vmatprep.subr.bf16.mxu0 0
  %587 = vmatpush1.bf16.msra.mxu0 %v436
  %588 = vmatprep.subr.bf16.mxu0 0
  %589 = vmatpush1.bf16.msra.mxu0 %v437
  %590 = vmatprep.subr.bf16.mxu0 0
  %591 = vmatpush1.bf16.msra.mxu0 %v438
  %592 = vmatprep.subr.bf16.mxu0 0
  %593 = vmatpush1.bf16.msra.mxu0 %v439
  %594 = vmatprep.mubr.bf16.mxu0 %v189
  %595 = vmatmul.mubr.bf16.gmra.mrb[0].mxu0 %v188
  %v596 = vpop.f32.mrb[0].mxu0
  %v597 = vadd.f32 %v548, %v596
  %v598 = vpop.f32.mrb[0].mxu0
  %v599 = vpop.f32.mrb[0].mxu0
  %v600 = vadd.f32 %v551, %v599
  %v601 = vpop.f32.mrb[0].mxu0
  %602 = vmatprep.mubr.bf16.mxu0 %v196
  %603 = vmatmul.mubr.bf16.gmra.mrb[0].mxu0 %v195
  %v604 = vpop.f32.mrb[0].mxu0
  %v605 = vadd.f32 %v556, %v604
  %v606 = vpop.f32.mrb[0].mxu0
  %v607 = vpop.f32.mrb[0].mxu0
  %v608 = vadd.f32 %v559, %v607
  %v609 = vpop.f32.mrb[0].mxu0
  %610 = vdwg.mxu0
  %611 = vmatprep.subr.bf16.mxu0 0
  %612 = vmatpush1.bf16.msra.mxu0 %v440
  %613 = vmatprep.subr.bf16.mxu0 0
  %614 = vmatpush1.bf16.msra.mxu0 %v441
  %615 = vmatprep.subr.bf16.mxu0 0
  %616 = vmatpush1.bf16.msra.mxu0 %v442
  %617 = vmatprep.subr.bf16.mxu0 0
  %618 = vmatpush1.bf16.msra.mxu0 %v443
  %619 = vmatprep.subr.bf16.mxu0 0
  %620 = vmatpush1.bf16.msra.mxu0 %v444
  %621 = vmatprep.subr.bf16.mxu0 0
  %622 = vmatpush1.bf16.msra.mxu0 %v445
  %623 = vmatprep.subr.bf16.mxu0 0
  %624 = vmatpush1.bf16.msra.mxu0 %v446
  %625 = vmatprep.subr.bf16.mxu0 0
  %626 = vmatpush1.bf16.msra.mxu0 %v447
  %627 = vmatprep.subr.bf16.mxu0 0
  %628 = vmatpush1.bf16.msra.mxu0 %v448
  %629 = vmatprep.subr.bf16.mxu0 0
  %630 = vmatpush1.bf16.msra.mxu0 %v449
  %631 = vmatprep.subr.bf16.mxu0 0
  %632 = vmatpush1.bf16.msra.mxu0 %v450
  %633 = vmatprep.subr.bf16.mxu0 0
  %634 = vmatpush1.bf16.msra.mxu0 %v451
  %635 = vmatprep.subr.bf16.mxu0 0
  %636 = vmatpush1.bf16.msra.mxu0 %v452
  %637 = vmatprep.subr.bf16.mxu0 0
  %638 = vmatpush1.bf16.msra.mxu0 %v453
  %639 = vmatprep.subr.bf16.mxu0 0
  %640 = vmatpush1.bf16.msra.mxu0 %v454
  %641 = vmatprep.subr.bf16.mxu0 0
  %642 = vmatpush1.bf16.msra.mxu0 %v455
  %643 = vmatprep.mubr.bf16.mxu0 %v191
  %644 = vmatmul.mubr.bf16.gmra.mrb[0].mxu0 %v190
  %v645 = vpop.f32.mrb[0].mxu0
  %v646 = vadd.f32 %v597, %v645
  %v647 = vpop.f32.mrb[0].mxu0
  %v648 = vpop.f32.mrb[0].mxu0
  %v649 = vadd.f32 %v600, %v648
  %v650 = vpop.f32.mrb[0].mxu0
  %651 = vmatprep.mubr.bf16.mxu0 %v198
  %652 = vmatmul.mubr.bf16.gmra.mrb[0].mxu0 %v197
  %v653 = vpop.f32.mrb[0].mxu0
  %v654 = vadd.f32 %v605, %v653
  %v655 = vpop.f32.mrb[0].mxu0
  %v656 = vpop.f32.mrb[0].mxu0
  %v657 = vadd.f32 %v608, %v656
  %v658 = vpop.f32.mrb[0].mxu0
  %659 = vdwg.mxu0
  %660 = vmatprep.subr.bf16.mxu0 0
  %661 = vmatpush1.bf16.msra.mxu0 %v456
  %662 = vmatprep.subr.bf16.mxu0 0
  %663 = vmatpush1.bf16.msra.mxu0 0
  %664 = vmatprep.subr.bf16.mxu0 0
  %665 = vmatpush1.bf16.msra.mxu0 0
  %666 = vmatprep.subr.bf16.mxu0 0
  %667 = vmatpush1.bf16.msra.mxu0 0
  %668 = vmatprep.subr.bf16.mxu0 0
  %669 = vmatpush1.bf16.msra.mxu0 0
  %670 = vmatprep.subr.bf16.mxu0 0
  %671 = vmatpush1.bf16.msra.mxu0 0
  %672 = vmatprep.subr.bf16.mxu0 0
  %673 = vmatpush1.bf16.msra.mxu0 0
  %674 = vmatprep.subr.bf16.mxu0 0
  %675 = vmatpush1.bf16.msra.mxu0 0
  %676 = vmatprep.subr.bf16.mxu0 0
  %677 = vmatpush1.bf16.msra.mxu0 0
  %678 = vmatprep.subr.bf16.mxu0 0
  %679 = vmatpush1.bf16.msra.mxu0 0
  %680 = vmatprep.subr.bf16.mxu0 0
  %681 = vmatpush1.bf16.msra.mxu0 0
  %682 = vmatprep.subr.bf16.mxu0 0
  %683 = vmatpush1.bf16.msra.mxu0 0
  %684 = vmatprep.subr.bf16.mxu0 0
  %685 = vmatpush1.bf16.msra.mxu0 0
  %686 = vmatprep.subr.bf16.mxu0 0
  %687 = vmatpush1.bf16.msra.mxu0 0
  %688 = vmatprep.subr.bf16.mxu0 0
  %689 = vmatpush1.bf16.msra.mxu0 0
  %690 = vmatprep.subr.bf16.mxu0 0
  %691 = vmatpush1.bf16.msra.mxu0 0
  %692 = vmatprep.mubr.bf16.mxu0 0
  %693 = vmatmul.mubr.bf16.gmra.mrb[0].mxu0 %v508
  %v694 = vpop.f32.mrb[0].mxu0
  %v695 = vadd.f32 %v646, %v694
  %v696 = vpop.f32.mrb[0].mxu0
  %v697 = vpop.f32.mrb[0].mxu0
  %v698 = vadd.f32 %v649, %v697
  %v699 = vpop.f32.mrb[0].mxu0
  %700 = vmatprep.mubr.bf16.mxu0 0
  %701 = vmatmul.mubr.bf16.gmra.mrb[0].mxu0 %v511
  %v702 = vpop.f32.mrb[0].mxu0
  %v703 = vadd.f32 %v654, %v702
  %v704 = vpop.f32.mrb[0].mxu0
  %v705 = vpop.f32.mrb[0].mxu0
  %v706 = vadd.f32 %v657, %v705
  %v707 = vpop.f32.mrb[0].mxu0
  %708 = vdwg.mxu0
  %v709 = vmax.f32 %v695, 0.0
  %v710 = vmax.f32 %v698, 0.0
  %v711 = vmax.f32 %v703, 0.0
  %v712 = vmax.f32 %v706, 0.0
  %v713 = vld [vmem:[%s3] sm:$0xff]
  %v714 = vld [vmem:[%s3 + $0x8] sm:$0xff]
  %v715 = vld [vmem:[%s3 + $0x10] sm:$0xff]
  %v716 = vld [vmem:[%s3 + $0x18] sm:$0xff]
  %v717 = vld [vmem:[%s4] sm:$0x1]
  %v719 = vlaneseq
  %v720 = vshrl.u32 %v719, 7
  %v721 = vsub.s32 0, %v720
  %v722 = vrot.slane %v717, %v721
  %vm724 = vcmask 261120
  %v726 = vsel %vm724, %v709, 0
  %v729 = vsel %vm724, %v710, 0
  %v732 = vsel %vm724, %v711, 0
  %v735 = vsel %vm724, %v712, 0
  %737 = vmatprep.subr.mxu0 0.0
  %738 = vmatpush1.msra.mxu0 %v713
  %739 = vmatprep.subr.mxu0 0.0
  %740 = vmatpush1.msra.mxu0 %v714
  %741 = vmatprep.subr.mxu0 0.0
  %742 = vmatpush1.msra.mxu0 %v715
  %743 = vmatprep.subr.mxu0 0.0
  %744 = vmatpush1.msra.mxu0 %v716
  %745 = vmatprep.subr.mxu0 0.0
  %746 = vmatpush1.msra.mxu0 0.0
  %747 = vmatprep.subr.mxu0 0.0
  %748 = vmatpush1.msra.mxu0 0.0
  %749 = vmatprep.subr.mxu0 0.0
  %750 = vmatpush1.msra.mxu0 0.0
  %751 = vmatprep.subr.mxu0 0.0
  %752 = vmatpush1.msra.mxu0 0.0
  %753 = vmatprep.subr.mxu0 0.0
  %754 = vmatpush1.msra.mxu0 0.0
  %755 = vmatprep.subr.mxu0 0.0
  %756 = vmatpush1.msra.mxu0 0.0
  %757 = vmatprep.subr.mxu0 0.0
  %758 = vmatpush1.msra.mxu0 0.0
  %759 = vmatprep.subr.mxu0 0.0
  %760 = vmatpush1.msra.mxu0 0.0
  %761 = vmatprep.subr.mxu0 0.0
  %762 = vmatpush1.msra.mxu0 0.0
  %763 = vmatprep.subr.mxu0 0.0
  %764 = vmatpush1.msra.mxu0 0.0
  %765 = vmatprep.subr.mxu0 0.0
  %766 = vmatpush1.msra.mxu0 0.0
  %767 = vmatprep.subr.mxu0 0.0
  %768 = vmatpush1.msra.mxu0 0.0
  %769 = vmatprep.subr.mxu0 0.0
  %770 = vmatpush1.msra.mxu0 0.0
  %771 = vmatprep.subr.mxu0 0.0
  %772 = vmatpush1.msra.mxu0 0.0
  %773 = vmatprep.subr.mxu0 0.0
  %774 = vmatpush1.msra.mxu0 0.0
  %775 = vmatprep.subr.mxu0 0.0
  %776 = vmatpush1.msra.mxu0 0.0
  %777 = vmatprep.subr.mxu0 0.0
  %778 = vmatpush1.msra.mxu0 0.0
  %779 = vmatprep.subr.mxu0 0.0
  %780 = vmatpush1.msra.mxu0 0.0
  %781 = vmatprep.subr.mxu0 0.0
  %782 = vmatpush1.msra.mxu0 0.0
  %783 = vmatprep.subr.mxu0 0.0
  %784 = vmatpush1.msra.mxu0 0.0
  %785 = vmatprep.subr.mxu0 0.0
  %786 = vmatpush1.msra.mxu0 0.0
  %787 = vmatprep.subr.mxu0 0.0
  %788 = vmatpush1.msra.mxu0 0.0
  %789 = vmatprep.subr.mxu0 0.0
  %790 = vmatpush1.msra.mxu0 0.0
  %791 = vmatprep.subr.mxu0 0.0
  %792 = vmatpush1.msra.mxu0 0.0
  %793 = vmatprep.subr.mxu0 0.0
  %794 = vmatpush1.msra.mxu0 0.0
  %795 = vmatprep.subr.mxu0 0.0
  %796 = vmatpush1.msra.mxu0 0.0
  %797 = vmatprep.subr.mxu0 0.0
  %798 = vmatpush1.msra.mxu0 0.0
  %799 = vmatprep.subr.mxu0 0.0
  %800 = vmatpush1.msra.mxu0 0.0
  %801 = vmatprep.mubr.f32.mxu0 0.0
  %802 = vmatmul.mubr.f32.gmra.mrb[0].mxu0 %v726
  %v803 = vpop.f32.mrb[0].mxu0
  %v804 = vadd.f32 %v722, %v803
  %v805 = vpop.f32.mrb[0].mxu0
  %806 = vmatprep.mubr.f32.mxu0 0.0
  %807 = vmatmul.mubr.f32.gmra.mrb[0].mxu0 %v729
  %v808 = vpop.f32.mrb[0].mxu0
  %v809 = vadd.f32 %v722, %v808
  %v810 = vpop.f32.mrb[0].mxu0
  %811 = vmatprep.mubr.f32.mxu0 0.0
  %812 = vmatmul.mubr.f32.gmra.mrb[0].mxu0 %v732
  %v813 = vpop.f32.mrb[0].mxu0
  %v814 = vadd.f32 %v722, %v813
  %v815 = vpop.f32.mrb[0].mxu0
  %816 = vmatprep.mubr.f32.mxu0 0.0
  %817 = vmatmul.mubr.f32.gmra.mrb[0].mxu0 %v735
  %v818 = vpop.f32.mrb[0].mxu0
  %v819 = vadd.f32 %v722, %v818
  %v820 = vpop.f32.mrb[0].mxu0
  %821 = vdwg.mxu0
  %v822 = vlaneseq
  %v823 = vand.u32 %v822, 127
  %vm824 = vcmp.lt.s32.totalorder %v823, 10
  %v825 = vsel %vm824, %v804, -1e+30
  %v826 = vsel %vm824, %v809, -1e+30
  %v827 = vsel %vm824, %v814, -1e+30
  %v828 = vsel %vm824, %v819, -1e+30
  %829 = vmax.xlane.f32.xlu0 %v825
  %v830 = vpop.xlane.xlu0 %829
  %831 = vmax.xlane.f32.xlu0 %v826
  %v832 = vpop.xlane.xlu0 %831
  %833 = vmax.xlane.f32.xlu0 %v827
  %v834 = vpop.xlane.xlu0 %833
  %835 = vmax.xlane.f32.xlu0 %v828
  %v836 = vpop.xlane.xlu0 %835
  %v837 = vsub.f32 %v825, %v830
  %v838 = vsub.f32 %v826, %v832
  %v839 = vsub.f32 %v827, %v834
  %v840 = vsub.f32 %v828, %v836
  %v841 = vmul.f32 %v837, 1.442695
  %v842 = vpow.pop %v841
  %v843 = vmul.f32 %v838, 1.442695
  %v844 = vpow.pop %v843
  %v845 = vmul.f32 %v839, 1.442695
  %v846 = vpow.pop %v845
  %v847 = vmul.f32 %v840, 1.442695
  %v848 = vpow.pop %v847
  %849 = vadd.xlane.f32.xlu0 %v842
  %v850 = vpop.xlane.xlu0 %849
  %851 = vadd.xlane.f32.xlu0 %v844
  %v852 = vpop.xlane.xlu0 %851
  %853 = vadd.xlane.f32.xlu0 %v846
  %v854 = vpop.xlane.xlu0 %853
  %855 = vadd.xlane.f32.xlu0 %v848
  %v856 = vpop.xlane.xlu0 %855
  %v857 = vlog2.pop %v850
  %v858 = vmul.f32 %v857, 0.6931472
  %v859 = vlog2.pop %v852
  %v860 = vmul.f32 %v859, 0.6931472
  %v861 = vlog2.pop %v854
  %v862 = vmul.f32 %v861, 0.6931472
  %v863 = vlog2.pop %v856
  %v864 = vmul.f32 %v863, 0.6931472
  %v865 = vsub.f32 %v837, %v858
  %v866 = vsub.f32 %v838, %v860
  %v867 = vsub.f32 %v839, %v862
  %v868 = vsub.f32 %v840, %v864
  %869 = vst [vmem:[%s5] sm:$0xff] %v865
  %870 = vst [vmem:[%s5 + $0x8] sm:$0xff] %v866
  %871 = vst [vmem:[%s5 + $0x10] sm:$0xff] %v867
  %872 = vst [vmem:[%s5 + $0x18] sm:$0xff] %v868
  // Predicated region
  $region22: #{mlp_forward.1} parent=0 // pred_check
    _
  $region23: #{mlp_forward.1} parent=0 // pred_check_branch
    %874 = sbr.rel (0) target = $region25
  $region24: #{mlp_forward.1} parent=0 // pred_region
    _
  $region25: #{mlp_forward.1} parent=0 // pred_fallthru
    _
  // Predicated region
  $region26: #{mlp_forward.1} parent=0 // pred_check
    _
  $region27: #{mlp_forward.1} parent=0 // pred_check_branch
    %876 = sbr.rel (0) target = $region29
  $region28: #{mlp_forward.1} parent=0 // pred_region
    _
  $region29: #{mlp_forward.1} parent=0 // pred_fallthru
    _

</llo_original>
